<compile_context>
chip_gen: v5e
topology: v5e:2x2
jax: 0.10.0
libtpu: 0.0.40
codegen_flags: <defaults>
</compile_context>

<pallas_src>
import functools

import jax
import jax.numpy as jnp
from jax.experimental import pallas as pl
from jax.experimental.pallas import tpu as pltpu

_MAX_TILE = 2048       # lane-dim tile cap (multiple of 128)
_RANK1_MAX_F = 8       # use VPU rank-1 FMAs instead of the MXU when F <= this


def _round_up(x, m):
    return ((x + m - 1) // m) * m


def _choose_tile(n, max_tile=_MAX_TILE):
    """Lane tile: large enough to amortize per-grid-step overhead, but keep
    >= 2 grid steps when possible so the 'parallel' axis feeds both v7x TCs."""
    npad = _round_up(max(n, 1), 128)
    if npad < 256:
        return 128
    half = (npad // 2) // 128 * 128
    return min(max_tile, max(half, 128))


def _x_contribution(xt_ref, w1x_ref, c1_ref, use_rank1):
    """h1_pre = W1x @ xt + c1, on the MXU or as F rank-1 VPU FMAs."""
    if use_rank1:
        # K (= num_features) is tiny: skip the MXU push/pop round trip.
        # Upcast to f32 so elementwise work stays f32 (no bf16 VALU on v5e).
        xt = xt_ref[...].astype(jnp.float32)        # (F, TILE)
        w1x = w1x_ref[...].astype(jnp.float32)      # (H, F)
        h = c1_ref[...]                             # (H, 1) -> broadcasts
        for f in range(xt.shape[0]):
            h = h + w1x[:, f:f + 1] * xt[f:f + 1, :]
        return h                                    # (H, TILE)
    return jnp.dot(w1x_ref[...], xt_ref[...],
                   preferred_element_type=jnp.float32) + c1_ref[...]


def _eval_kernel(xt_ref, w1x_ref, c1_ref, w2d_ref, cd_ref, out_ref, *, use_rank1):
    # only_return_standard_out=True path: train mask is identically zero, so
    # there is no y input, no mask and no scalar prefetch.
    h = _x_contribution(xt_ref, w1x_ref, c1_ref, use_rank1)   # (H, TILE)
    h = jnp.maximum(h, 0.0)
    # Folded layer-2 + decoder: VPU multiply + sublane (XLU) reduce.
    out_ref[...] = jnp.sum(h * w2d_ref[...], axis=0, keepdims=True) + cd_ref[...]


def _full_kernel(scalars_ref, xt_ref, y_ref,
                 w1x_ref, w1y_ref, b1y_ref, c1_ref, w2d_ref, cd_ref,
                 out_ref, *, use_rank1):
    tile = out_ref.shape[-1]
    i = pl.program_id(0)
    threshold = scalars_ref[0]   # single_eval_pos * batch
    row_start = scalars_ref[1]   # global index of first row handled here

    # Train-position mask computed in-kernel (no padded (N,1) mask DMA).
    lane = jax.lax.broadcasted_iota(jnp.int32, (1, tile), 1)
    mask = ((row_start + i * tile + lane) < threshold).astype(jnp.float32)

    h = _x_contribution(xt_ref, w1x_ref, c1_ref, use_rank1)            # (H, TILE)
    # Folded y encoder: mask * (y * (wy@w1)^T + (by@w1)^T)  (pure VPU).
    h = h + mask * (w1y_ref[...] * y_ref[...] + b1y_ref[...])
    h = jnp.maximum(h, 0.0)
    out_ref[...] = jnp.sum(h * w2d_ref[...], axis=0, keepdims=True) + cd_ref[...]


def _run_eval(xt_pad, folded, tile, use_rank1):
    f, n_pad = xt_pad.shape
    n_tiles = n_pad // tile
    weights = (folded["w1x"], folded["c1"], folded["w2d"], folded["cd"])

    def const_spec(a):
        # Full-array block, constant index map -> VMEM-resident across tiles.
        return pl.BlockSpec(a.shape, lambda i: (0, 0))

    grid_spec = pltpu.PrefetchScalarGridSpec(
        num_scalar_prefetch=0,
        grid=(n_tiles,),
        in_specs=[pl.BlockSpec((f, tile), lambda i: (0, i))]
                 + [const_spec(a) for a in weights],
        out_specs=pl.BlockSpec((1, tile), lambda i: (0, i)),
    )
    kernel = functools.partial(_eval_kernel, use_rank1=use_rank1)
    return pl.pallas_call(
        kernel,
        out_shape=jax.ShapeDtypeStruct((1, n_pad), jnp.float32),
        grid_spec=grid_spec,
        compiler_params=pltpu.CompilerParams(
            dimension_semantics=("parallel",),          # megacore sharding on v7x
            vmem_limit_bytes=32 * 1024 * 1024),         # safe on v5e/v6e/v7x
    )(xt_pad, *weights)


def _run_full(xt_pad, y_pad, scalars, folded, tile, use_rank1):
    f, n_pad = xt_pad.shape
    n_tiles = n_pad // tile
    weights = (folded["w1x"], folded["w1y"], folded["b1y"],
               folded["c1"], folded["w2d"], folded["cd"])

    def const_spec(a):
        return pl.BlockSpec(a.shape, lambda i, s: (0, 0))

    grid_spec = pltpu.PrefetchScalarGridSpec(
        num_scalar_prefetch=1,
        grid=(n_tiles,),
        in_specs=[pl.BlockSpec((f, tile), lambda i, s: (0, i)),
                  pl.BlockSpec((1, tile), lambda i, s: (0, i))]
                 + [const_spec(a) for a in weights],
        out_specs=pl.BlockSpec((1, tile), lambda i, s: (0, i)),
    )
    kernel = functools.partial(_full_kernel, use_rank1=use_rank1)
    return pl.pallas_call(
        kernel,
        out_shape=jax.ShapeDtypeStruct((1, n_pad), jnp.float32),
        grid_spec=grid_spec,
        compiler_params=pltpu.CompilerParams(
            dimension_semantics=("parallel",),
            vmem_limit_bytes=32 * 1024 * 1024),
    )(scalars, xt_pad, y_pad, *weights)


def _fold_params(params, compute_dtype):
    """Exact algebraic folds: embedding+layer1 and layer2+decoder."""
    w1 = params["w1"]
    return {
        "w1x": (params["wx"] @ w1).T.astype(compute_dtype),          # (H, F)
        "c1":  (params["bx"] @ w1 + params["b1"]).T,                  # (H, 1)
        "w1y": (params["wy"] @ w1).T,                                 # (H, 1)
        "b1y": (params["by"] @ w1).T,                                 # (H, 1)
        "w2d": params["w2"] @ params["wd"],                           # (H, 1)
        "cd":  params["b2"] @ params["wd"] + params["bd"],            # (1, 1)
    }


def make_params(hidden=32, num_features=4):
    """Deterministic synthetic parameters for the wrapped regressor."""
    key = jax.random.PRNGKey(42)
    ks = jax.random.split(key, 6)
    f32 = jnp.float32
    return {
        "wx": jax.random.normal(ks[0], (num_features, hidden), f32) * 0.1,
        "bx": jnp.zeros((1, hidden), f32),
        "wy": jax.random.normal(ks[1], (1, hidden), f32) * 0.1,
        "by": jnp.zeros((1, hidden), f32),
        "w1": jax.random.normal(ks[2], (hidden, hidden), f32) * 0.1,
        "b1": jnp.zeros((1, hidden), f32),
        "w2": jax.random.normal(ks[3], (hidden, hidden), f32) * 0.1,
        "b2": jnp.zeros((1, hidden), f32),
        "wd": jax.random.normal(ks[4], (hidden, 1), f32) * 0.1,
        "bd": jnp.zeros((1, 1), f32),
    }


@functools.partial(jax.jit, static_argnames=("single_eval_pos",
                                             "only_return_standard_out",
                                             "compute_dtype"))
def model_wrapper_forward(params, X, y, single_eval_pos,
                          only_return_standard_out=True, categorical_inds=None,
                          compute_dtype=jnp.float32):
    """ModelWrapper.forward:
        return self.model(None, X, y, single_eval_pos=..., ...)

    X: (seq, batch, num_features) float32
    y: (seq, batch) float32  (labels; only the first `single_eval_pos` are used)
    Returns predictions for the eval positions: (seq - single_eval_pos, batch).
    Set compute_dtype=jnp.bfloat16 on v6e/v7x to halve X HBM traffic
    (accumulation and elementwise math stay f32).
    """
    del categorical_inds  # metadata only; no numeric effect in this synthetic model
    seq, batch, num_features = X.shape
    total = seq * batch
    use_rank1 = num_features <= _RANK1_MAX_F

    folded = _fold_params(params, compute_dtype)

    # Only eval rows are needed for the standard output; skip train-row compute.
    row_start = single_eval_pos * batch if only_return_standard_out else 0
    n = total - row_start

    tile = _choose_tile(n)
    n_pad = _round_up(n, tile)

    # Transposed lane-dense slab, single pad op (no zeros+set materialization).
    x_rows = X.reshape(total, num_features)[row_start:]                  # (n, F)
    xt = jnp.pad(x_rows.T.astype(compute_dtype), ((0, 0), (0, n_pad - n)))

    if only_return_standard_out:
        out_row = _run_eval(xt, folded, tile, use_rank1)                 # (1, n_pad)
        return out_row[0, :n].reshape(seq - single_eval_pos, batch)

    y_rows = y.reshape(total).astype(jnp.float32)
    yr = jnp.pad(y_rows[None, :], ((0, 0), (0, n_pad - n)))
    scalars = jnp.array([single_eval_pos * batch, row_start], jnp.int32)
    out_row = _run_full(xt, yr, scalars, folded, tile, use_rank1)        # (1, n_pad)
    full = out_row[0, :n].reshape(seq, batch)
    return {"standard": full[single_eval_pos:], "all_positions": full}


def _ref_forward(params, X, y, sep):
    """Reference in plain JAX (unfolded math, no Pallas)."""
    s, b, f = X.shape
    pos = jnp.arange(s)[:, None, None]
    m = (pos < sep).astype(jnp.float32)
    x_emb = X @ params["wx"] + params["bx"]
    y_emb = ((y[:, :, None] * m) @ params["wy"] + params["by"]) * m
    h = x_emb + y_emb
    h = jnp.maximum(h @ params["w1"] + params["b1"], 0.0)
    h = h @ params["w2"] + params["b2"]
    out = (h @ params["wd"] + params["bd"])[..., 0]
    return out, out[sep:]


if __name__ == "__main__":
    num_features, hidden = 4, 32
    params = make_params(hidden=hidden, num_features=num_features)
    categorical_inds = [[], []]  # one (empty) list per batch item

    def run_case(seq, batch, sep):
        key = jax.random.PRNGKey(0)
        kx, ky = jax.random.split(key)
        X = jax.random.normal(kx, (seq, batch, num_features), jnp.float32)
        y = jax.random.normal(ky, (seq, batch), jnp.float32)
        ref_full, ref_eval = _ref_forward(params, X, y, sep)

        # Hot path: standard output only (eval-only specialized kernel).
        preds = model_wrapper_forward(
            params, X, y, single_eval_pos=sep,
            only_return_standard_out=True, categorical_inds=categorical_inds)
        preds = jax.block_until_ready(preds)
        assert preds.shape == (seq - sep, batch), preds.shape
        assert preds.dtype == jnp.float32
        assert jnp.allclose(preds, ref_eval, atol=1e-5, rtol=1e-5)

        # All-positions path (mask active inside the kernel).
        full = model_wrapper_forward(
            params, X, y, single_eval_pos=sep,
            only_return_standard_out=False, categorical_inds=categorical_inds)
        full = jax.block_until_ready(full)
        assert jnp.allclose(full["standard"], ref_eval, atol=1e-5, rtol=1e-5)
        assert jnp.allclose(full["all_positions"], ref_full, atol=1e-5, rtol=1e-5)

        # bf16 input path (halves HBM traffic on v6e/v7x); looser tolerance.
        preds_bf16 = model_wrapper_forward(
            params, X, y, single_eval_pos=sep,
            only_return_standard_out=True, categorical_inds=categorical_inds,
            compute_dtype=jnp.bfloat16)
        preds_bf16 = jax.block_until_ready(preds_bf16)
        assert jnp.allclose(preds_bf16, ref_eval, atol=1e-2, rtol=5e-2)

    # Small toy shape implied by the interface (seq=8, batch=2, F=4, H=32).
    run_case(seq=8, batch=2, sep=4)
    # Larger shape: multiple grid tiles + mask crossing a tile boundary.
    run_case(seq=192, batch=4, sep=100)

    print("KERNEL_OK")
</pallas_src>

<mosaic_0001>
module attributes {stable_mosaic.version = 11 : i64} {
  func.func @_eval_kernel(%arg0: i32, %arg1: memref<4x128xf32, #tpu.memory_space<vmem>>, %arg2: memref<32x4xf32, #tpu.memory_space<vmem>>, %arg3: memref<32x1xf32, #tpu.memory_space<vmem>>, %arg4: memref<32x1xf32, #tpu.memory_space<vmem>>, %arg5: memref<1x1xf32, #tpu.memory_space<vmem>>, %arg6: memref<1x128xf32, #tpu.memory_space<vmem>>) attributes {dimension_semantics = [#tpu.dimension_semantics<parallel>], iteration_bounds = array<i64: 1>, scalar_prefetch = 0 : i64, scratch_operands = 0 : i64, tpu.core_type = #tpu.core_type<tc>, window_params = [{transform_indices = @transform_0, window_bounds = array<i64: 4, 128>}, {pipeline_mode = #tpu.pipeline_mode<synchronous>, transform_indices = @transform_1, window_bounds = array<i64: 32, 4>}, {pipeline_mode = #tpu.pipeline_mode<synchronous>, transform_indices = @transform_2, window_bounds = array<i64: 32, 1>}, {pipeline_mode = #tpu.pipeline_mode<synchronous>, transform_indices = @transform_3, window_bounds = array<i64: 32, 1>}, {pipeline_mode = #tpu.pipeline_mode<synchronous>, transform_indices = @transform_4, window_bounds = array<i64: 1, 1>}, {transform_indices = @transform_5, window_bounds = array<i64: 1, 128>}]} {
    %c0 = arith.constant 0 : index
    %c0_0 = arith.constant 0 : index
    %0 = vector.load %arg1[%c0, %c0_0] : memref<4x128xf32, #tpu.memory_space<vmem>>, vector<4x128xf32>
    %c0_1 = arith.constant 0 : index
    %c0_2 = arith.constant 0 : index
    %1 = vector.load %arg2[%c0_1, %c0_2] : memref<32x4xf32, #tpu.memory_space<vmem>>, vector<32x4xf32>
    %c0_3 = arith.constant 0 : index
    %c0_4 = arith.constant 0 : index
    %2 = vector.load %arg3[%c0_3, %c0_4] : memref<32x1xf32, #tpu.memory_space<vmem>>, vector<32x1xf32>
    %3 = vector.extract_strided_slice %1 {offsets = [0, 0], sizes = [32, 1], strides = [1, 1]} : vector<32x4xf32> to vector<32x1xf32>
    %4 = vector.extract_strided_slice %0 {offsets = [0, 0], sizes = [1, 128], strides = [1, 1]} : vector<4x128xf32> to vector<1x128xf32>
    %5 = vector.broadcast %3 : vector<32x1xf32> to vector<32x128xf32>
    %6 = vector.broadcast %4 : vector<1x128xf32> to vector<32x128xf32>
    %7 = arith.mulf %5, %6 : vector<32x128xf32>
    %8 = vector.broadcast %2 : vector<32x1xf32> to vector<32x128xf32>
    %9 = arith.addf %8, %7 : vector<32x128xf32>
    %10 = vector.extract_strided_slice %1 {offsets = [0, 1], sizes = [32, 1], strides = [1, 1]} : vector<32x4xf32> to vector<32x1xf32>
    %11 = vector.extract_strided_slice %0 {offsets = [1, 0], sizes = [1, 128], strides = [1, 1]} : vector<4x128xf32> to vector<1x128xf32>
    %12 = vector.broadcast %10 : vector<32x1xf32> to vector<32x128xf32>
    %13 = vector.broadcast %11 : vector<1x128xf32> to vector<32x128xf32>
    %14 = arith.mulf %12, %13 : vector<32x128xf32>
    %15 = arith.addf %9, %14 : vector<32x128xf32>
    %16 = vector.extract_strided_slice %1 {offsets = [0, 2], sizes = [32, 1], strides = [1, 1]} : vector<32x4xf32> to vector<32x1xf32>
    %17 = vector.extract_strided_slice %0 {offsets = [2, 0], sizes = [1, 128], strides = [1, 1]} : vector<4x128xf32> to vector<1x128xf32>
    %18 = vector.broadcast %16 : vector<32x1xf32> to vector<32x128xf32>
    %19 = vector.broadcast %17 : vector<1x128xf32> to vector<32x128xf32>
    %20 = arith.mulf %18, %19 : vector<32x128xf32>
    %21 = arith.addf %15, %20 : vector<32x128xf32>
    %22 = vector.extract_strided_slice %1 {offsets = [0, 3], sizes = [32, 1], strides = [1, 1]} : vector<32x4xf32> to vector<32x1xf32>
    %23 = vector.extract_strided_slice %0 {offsets = [3, 0], sizes = [1, 128], strides = [1, 1]} : vector<4x128xf32> to vector<1x128xf32>
    %24 = vector.broadcast %22 : vector<32x1xf32> to vector<32x128xf32>
    %25 = vector.broadcast %23 : vector<1x128xf32> to vector<32x128xf32>
    %26 = arith.mulf %24, %25 : vector<32x128xf32>
    %27 = arith.addf %21, %26 : vector<32x128xf32>
    %cst = arith.constant 0.000000e+00 : f32
    %28 = vector.broadcast %cst : f32 to vector<32x128xf32>
    %29 = arith.maximumf %27, %28 : vector<32x128xf32>
    %c0_5 = arith.constant 0 : index
    %c0_6 = arith.constant 0 : index
    %30 = vector.load %arg4[%c0_5, %c0_6] : memref<32x1xf32, #tpu.memory_space<vmem>>, vector<32x1xf32>
    %31 = vector.broadcast %30 : vector<32x1xf32> to vector<32x128xf32>
    %32 = arith.mulf %29, %31 : vector<32x128xf32>
    %cst_7 = arith.constant dense<0.000000e+00> : vector<128xf32>
    %33 = vector.multi_reduction <add>, %32, %cst_7 [0] : vector<32x128xf32> to vector<128xf32>
    %34 = vector.shape_cast %33 : vector<128xf32> to vector<1x128xf32>
    %c0_8 = arith.constant 0 : index
    %c0_9 = arith.constant 0 : index
    %35 = vector.load %arg5[%c0_8, %c0_9] : memref<1x1xf32, #tpu.memory_space<vmem>>, vector<1x1xf32>
    %36 = vector.broadcast %35 : vector<1x1xf32> to vector<1x128xf32>
    %37 = arith.addf %34, %36 : vector<1x128xf32>
    %c0_10 = arith.constant 0 : index
    %c0_11 = arith.constant 0 : index
    %38 = vector.load %arg6[%c0_10, %c0_11] : memref<1x128xf32, #tpu.memory_space<vmem>>, vector<1x128xf32>
    tpu.vector_store %arg6[%c0_10, %c0_11], %37 {strides = array<i32>} : memref<1x128xf32, #tpu.memory_space<vmem>>, vector<1x128xf32>,
    return
  }
  func.func @transform_0(%arg0: i32) -> (i32, i32) {
    %c0_i32 = arith.constant 0 : i32
    %c0_i32_0 = arith.constant 0 : i32
    return %c0_i32, %arg0 : i32, i32
  }
  func.func @transform_1(%arg0: i32) -> (i32, i32) {
    %c0_i32 = arith.constant 0 : i32
    %c0_i32_0 = arith.constant 0 : i32
    %c0_i32_1 = arith.constant 0 : i32
    return %c0_i32, %c0_i32_0 : i32, i32
  }
  func.func @transform_2(%arg0: i32) -> (i32, i32) {
    %c0_i32 = arith.constant 0 : i32
    %c0_i32_0 = arith.constant 0 : i32
    %c0_i32_1 = arith.constant 0 : i32
    return %c0_i32, %c0_i32_0 : i32, i32
  }
  func.func @transform_3(%arg0: i32) -> (i32, i32) {
    %c0_i32 = arith.constant 0 : i32
    %c0_i32_0 = arith.constant 0 : i32
    %c0_i32_1 = arith.constant 0 : i32
    return %c0_i32, %c0_i32_0 : i32, i32
  }
  func.func @transform_4(%arg0: i32) -> (i32, i32) {
    %c0_i32 = arith.constant 0 : i32
    %c0_i32_0 = arith.constant 0 : i32
    %c0_i32_1 = arith.constant 0 : i32
    return %c0_i32, %c0_i32_0 : i32, i32
  }
  func.func @transform_5(%arg0: i32) -> (i32, i32) {
    %c0_i32 = arith.constant 0 : i32
    %c0_i32_0 = arith.constant 0 : i32
    return %c0_i32, %arg0 : i32, i32
  }
}

</mosaic_0001>

<llo_original>
// kernel: squeeze.1
$region0: #{squeeze.1}
  %s0 = inlined_call_operand.vmem [shape: f32[8], index: 0, kind: input, shape index: {}]
  %s1 = inlined_call_operand.vmem [shape: f32[4,2], index: 1, kind: output, shape index: {}]
  $region1: #{squeeze.1} parent=0
    #allocation0 [shape = 'u8[4096]{0}', space=vmem, size = 0x1000, scoped, tag = 'scoped mem for output reshape']
    #allocation1 [shape = 'u8[4096]{0}', space=vmem, size = 0x1000, scoped, tag = 'scoped mem for input reshape']
    %s3 = ssub.s32 2, 1
    %v4 = vld [vmem:[%s0] sm:%s3]
    %5 = vst [vmem:[#allocation1] sm:%s3] %v4
    %v6 = vld [vmem:[#allocation1] sm:$0x1]
    %vm7 = vcmask 15360
    %8 = vst.msk [vmem:[#allocation0] sm:$0x1] %vm7, %v6
    %v9 = vld [vmem:[#allocation1] sm:$0x1]
    %10 = vrot.lane.b32.xlu0 %v9, 126
    %v11 = vpop.permute.xlu0 %10
    %vm12 = vcmask 15360
    %s13 = scalar_lea.vmem [#allocation0], 1
    %14 = vst.msk [vmem:[%s13] sm:$0x1] %vm12, %v11
    %v15 = vld [vmem:[#allocation1] sm:$0x1]
    %16 = vrot.lane.b32.xlu0 %v15, 124
    %v17 = vpop.permute.xlu0 %16
    %vm18 = vcmask 15360
    %s19 = scalar_lea.vmem [#allocation0], 2
    %20 = vst.msk [vmem:[%s19] sm:$0x1] %vm18, %v17
    %v21 = vld [vmem:[#allocation1] sm:$0x1]
    %22 = vrot.lane.b32.xlu0 %v21, 122
    %v23 = vpop.permute.xlu0 %22
    %vm24 = vcmask 15360
    %s25 = scalar_lea.vmem [#allocation0], 3
    %26 = vst.msk [vmem:[%s25] sm:$0x1] %vm24, %v23
    %s28 = ssub.s32 16, 1
    %v29 = vld [vmem:[#allocation0] sm:%s28]
    %s31 = ssub.s32 16, 1
    %32 = vst [vmem:[%s1] sm:%s31] %v29

// kernel: model_wrapper_forward.1
$region0: #{model_wrapper_forward.1}
  #allocation0 [shape = 'u32[]', space=smem, size = 0x4, offset = 0x4, fixed_abs, tag = 'smem constant byte address 0x4 - core index']
  #allocation1 [shape = 'u32[72,128]{1,0:T(1,128)}', space=vmem, size = 0x9000, scoped, tag = 'internal scratch']
  #allocation2 [shape = 'f32[1,1]{1,0:T(1,128)S(1)}', space=vmem, size = 0x200, scoped, tag = 'scoped memory for model_wrapper_forward.1']
  %s0 = inlined_call_operand.vmem [shape: f32[4,128], index: 0, kind: input, shape index: {}]
  %s1 = inlined_call_operand.vmem [shape: f32[32,4], index: 1, kind: input, shape index: {}]
  %s2 = inlined_call_operand.vmem [shape: f32[32,1], index: 2, kind: input, shape index: {}]
  %s3 = inlined_call_operand.vmem [shape: f32[32,1], index: 3, kind: input, shape index: {}]
  %s4 = inlined_call_operand.<no memory space> [shape: f32[1,1], index: 4, kind: input, shape index: {}]
  %s5 = inlined_call_operand.vmem [shape: f32[1,128], index: 5, kind: output, shape index: {}]
  %s6 = sld [smem:[#allocation0]]
  $region30: #{model_wrapper_forward.1} parent=0
    _
  %s8 = ssub.s32 1, %s6
  %s9 = scalar_select 0, %s8, %s6
  %v10 = vstv %s4
  %11 = vst [vmem:[#allocation2] sm:$0x1] %v10
  // Predicated region
  $region2: #{model_wrapper_forward.1} parent=0 // pred_check
    _
  $region3: #{model_wrapper_forward.1} parent=0 // pred_check_branch
    %13 = sbr.rel (0) target = $region5
  $region4: #{model_wrapper_forward.1} parent=0 // pred_region
    _
  $region5: #{model_wrapper_forward.1} parent=0 // pred_fallthru
    _
  // Predicated region
  $region6: #{model_wrapper_forward.1} parent=0 // pred_check
    _
  $region7: #{model_wrapper_forward.1} parent=0 // pred_check_branch
    %15 = sbr.rel (0) target = $region9
  $region8: #{model_wrapper_forward.1} parent=0 // pred_region
    _
  $region9: #{model_wrapper_forward.1} parent=0 // pred_fallthru
    _
  // Predicated region
  $region10: #{model_wrapper_forward.1} parent=0 // pred_check
    _
  $region11: #{model_wrapper_forward.1} parent=0 // pred_check_branch
    %17 = sbr.rel (0) target = $region13
  $region12: #{model_wrapper_forward.1} parent=0 // pred_region
    _
  $region13: #{model_wrapper_forward.1} parent=0 // pred_fallthru
    _
  // Predicated region
  $region14: #{model_wrapper_forward.1} parent=0 // pred_check
    _
  $region15: #{model_wrapper_forward.1} parent=0 // pred_check_branch
    %19 = sbr.rel (0) target = $region17
  $region16: #{model_wrapper_forward.1} parent=0 // pred_region
    _
  $region17: #{model_wrapper_forward.1} parent=0 // pred_fallthru
    _
  // Predicated region
  $region18: #{model_wrapper_forward.1} parent=0 // pred_check
    _
  $region19: #{model_wrapper_forward.1} parent=0 // pred_check_branch
    %21 = sbr.rel (0) target = $region21
  $region20: #{model_wrapper_forward.1} parent=0 // pred_region
    _
  $region21: #{model_wrapper_forward.1} parent=0 // pred_fallthru
    _
  %v22 = vld [vmem:[%s0] sm:$0xf]
  %v23 = vld [vmem:[%s1] sm:$0xff]
  %v24 = vld [vmem:[%s1 + $0x8] sm:$0xff]
  %v25 = vld [vmem:[%s1 + $0x10] sm:$0xff]
  %v26 = vld [vmem:[%s1 + $0x18] sm:$0xff]
  %v27 = vld [vmem:[%s2] sm:$0xff]
  %v28 = vld [vmem:[%s2 + $0x8] sm:$0xff]
  %v29 = vld [vmem:[%s2 + $0x10] sm:$0xff]
  %v30 = vld [vmem:[%s2 + $0x18] sm:$0xff]
  %32 = vset.pattern.permute.xlu0 0
  %33 = vperm.xlu0 %32, %v23
  %v34 = vpop.permute.xlu0 %33
  %37 = vset.pattern.permute.xlu0 0
  %38 = vperm.xlu0 %37, %v24
  %v39 = vpop.permute.xlu0 %38
  %42 = vset.pattern.permute.xlu0 0
  %43 = vperm.xlu0 %42, %v25
  %v44 = vpop.permute.xlu0 %43
  %47 = vset.pattern.permute.xlu0 0
  %48 = vperm.xlu0 %47, %v26
  %v49 = vpop.permute.xlu0 %48
  %v51 = vperm.slane %v22, 0
  %v52 = vmul.f32 %v34, %v51
  %v53 = vmul.f32 %v39, %v51
  %v54 = vmul.f32 %v44, %v51
  %v55 = vmul.f32 %v49, %v51
  %57 = vset.pattern.permute.xlu0 0
  %58 = vperm.xlu0 %57, %v27
  %v59 = vpop.permute.xlu0 %58
  %62 = vset.pattern.permute.xlu0 0
  %63 = vperm.xlu0 %62, %v28
  %v64 = vpop.permute.xlu0 %63
  %67 = vset.pattern.permute.xlu0 0
  %68 = vperm.xlu0 %67, %v29
  %v69 = vpop.permute.xlu0 %68
  %72 = vset.pattern.permute.xlu0 0
  %73 = vperm.xlu0 %72, %v30
  %v74 = vpop.permute.xlu0 %73
  %v76 = vadd.f32 %v59, %v52
  %v77 = vadd.f32 %v64, %v53
  %v78 = vadd.f32 %v69, %v54
  %v79 = vadd.f32 %v74, %v55
  %80 = vset.pattern.permute.xlu0 1
  %81 = vperm.xlu0 %80, %v23
  %v82 = vpop.permute.xlu0 %81
  %84 = vset.pattern.permute.xlu0 1
  %85 = vperm.xlu0 %84, %v24
  %v86 = vpop.permute.xlu0 %85
  %88 = vset.pattern.permute.xlu0 1
  %89 = vperm.xlu0 %88, %v25
  %v90 = vpop.permute.xlu0 %89
  %92 = vset.pattern.permute.xlu0 1
  %93 = vperm.xlu0 %92, %v26
  %v94 = vpop.permute.xlu0 %93
  %v96 = vperm.slane %v22, 1
  %v97 = vmul.f32 %v82, %v96
  %v98 = vmul.f32 %v86, %v96
  %v99 = vmul.f32 %v90, %v96
  %v100 = vmul.f32 %v94, %v96
  %v101 = vadd.f32 %v76, %v97
  %v102 = vadd.f32 %v77, %v98
  %v103 = vadd.f32 %v78, %v99
  %v104 = vadd.f32 %v79, %v100
  %105 = vset.pattern.permute.xlu0 2
  %106 = vperm.xlu0 %105, %v23
  %v107 = vpop.permute.xlu0 %106
  %109 = vset.pattern.permute.xlu0 2
  %110 = vperm.xlu0 %109, %v24
  %v111 = vpop.permute.xlu0 %110
  %113 = vset.pattern.permute.xlu0 2
  %114 = vperm.xlu0 %113, %v25
  %v115 = vpop.permute.xlu0 %114
  %117 = vset.pattern.permute.xlu0 2
  %118 = vperm.xlu0 %117, %v26
  %v119 = vpop.permute.xlu0 %118
  %v121 = vperm.slane %v22, 2
  %v122 = vmul.f32 %v107, %v121
  %v123 = vmul.f32 %v111, %v121
  %v124 = vmul.f32 %v115, %v121
  %v125 = vmul.f32 %v119, %v121
  %v126 = vadd.f32 %v101, %v122
  %v127 = vadd.f32 %v102, %v123
  %v128 = vadd.f32 %v103, %v124
  %v129 = vadd.f32 %v104, %v125
  %130 = vset.pattern.permute.xlu0 3
  %131 = vperm.xlu0 %130, %v23
  %v132 = vpop.permute.xlu0 %131
  %134 = vset.pattern.permute.xlu0 3
  %135 = vperm.xlu0 %134, %v24
  %v136 = vpop.permute.xlu0 %135
  %138 = vset.pattern.permute.xlu0 3
  %139 = vperm.xlu0 %138, %v25
  %v140 = vpop.permute.xlu0 %139
  %142 = vset.pattern.permute.xlu0 3
  %143 = vperm.xlu0 %142, %v26
  %v144 = vpop.permute.xlu0 %143
  %v146 = vperm.slane %v22, 3
  %v147 = vmul.f32 %v132, %v146
  %v148 = vmul.f32 %v136, %v146
  %v149 = vmul.f32 %v140, %v146
  %v150 = vmul.f32 %v144, %v146
  %v151 = vadd.f32 %v126, %v147
  %v152 = vadd.f32 %v127, %v148
  %v153 = vadd.f32 %v128, %v149
  %v154 = vadd.f32 %v129, %v150
  %v155 = vmax.f32 %v151, 0.0
  %v156 = vmax.f32 %v152, 0.0
  %v157 = vmax.f32 %v153, 0.0
  %v158 = vmax.f32 %v154, 0.0
  %v159 = vld [vmem:[%s3] sm:$0xff]
  %v160 = vld [vmem:[%s3 + $0x8] sm:$0xff]
  %v161 = vld [vmem:[%s3 + $0x10] sm:$0xff]
  %v162 = vld [vmem:[%s3 + $0x18] sm:$0xff]
  %164 = vset.pattern.permute.xlu0 0
  %165 = vperm.xlu0 %164, %v159
  %v166 = vpop.permute.xlu0 %165
  %169 = vset.pattern.permute.xlu0 0
  %170 = vperm.xlu0 %169, %v160
  %v171 = vpop.permute.xlu0 %170
  %174 = vset.pattern.permute.xlu0 0
  %175 = vperm.xlu0 %174, %v161
  %v176 = vpop.permute.xlu0 %175
  %179 = vset.pattern.permute.xlu0 0
  %180 = vperm.xlu0 %179, %v162
  %v181 = vpop.permute.xlu0 %180
  %v183 = vmul.f32 %v155, %v166
  %v184 = vmul.f32 %v156, %v171
  %v185 = vmul.f32 %v157, %v176
  %v186 = vmul.f32 %v158, %v181
  %v187 = vadd.f32 %v183, %v184
  %v188 = vadd.f32 %v187, %v185
  %v189 = vadd.f32 %v188, %v186
  %v190 = vrot.slane %v189, 4
  %v191 = vadd.f32 %v189, %v190
  %v192 = vrot.slane %v191, 2
  %v193 = vadd.f32 %v191, %v192
  %v194 = vrot.slane %v193, 1
  %v195 = vadd.f32 %v193, %v194
  %v196 = vld [vmem:[#allocation2] sm:$0x1]
  %198 = vset.pattern.permute.xlu0 0
  %199 = vperm.xlu0 %198, %v196
  %v200 = vpop.permute.xlu0 %199
  %v202 = vperm.slane %v200, 0
  %v203 = vadd.f32 %v195, %v202
  %204 = vst [vmem:[%s5] sm:$0x1] %v203
  // Predicated region
  $region22: #{model_wrapper_forward.1} parent=0 // pred_check
    _
  $region23: #{model_wrapper_forward.1} parent=0 // pred_check_branch
    %206 = sbr.rel (0) target = $region25
  $region24: #{model_wrapper_forward.1} parent=0 // pred_region
    _
  $region25: #{model_wrapper_forward.1} parent=0 // pred_fallthru
    _
  // Predicated region
  $region26: #{model_wrapper_forward.1} parent=0 // pred_check
    _
  $region27: #{model_wrapper_forward.1} parent=0 // pred_check_branch
    %208 = sbr.rel (0) target = $region29
  $region28: #{model_wrapper_forward.1} parent=0 // pred_region
    _
  $region29: #{model_wrapper_forward.1} parent=0 // pred_fallthru
    _

</llo_original>
